<compile_context>
chip_gen: v6e
topology: v6e:2x2x1
jax: 0.10.0
libtpu: 0.0.40
codegen_flags: <defaults>
</compile_context>

<pallas_src>
import functools

import jax
import jax.numpy as jnp
from jax import lax
from jax.experimental import pallas as pl
from jax.experimental.pallas import tpu as pltpu


# --------------------------------------------------------------------------
# Kernels
# --------------------------------------------------------------------------
def _rmsnorm_kernel(x_ref, w_ref, o_ref, *, eps: float):
    """Standard path: one normalized vector per row, `dim` on the lane axis."""
    x = x_ref[...].astype(jnp.float32)                        # x.float()
    ms = jnp.mean(jnp.square(x), axis=-1, keepdims=True)      # pow(2).mean(-1)
    # Fused f32 scale (rsqrt on EUP) + single downcast to the output dtype.
    o_ref[...] = (x * lax.rsqrt(ms + eps) * w_ref[...]).astype(o_ref.dtype)


def _rmsnorm_packed_kernel(x_ref, w_ref, o_ref, *, eps: float, dim: int, fold: int):
    """Lane-packed path: `fold` consecutive rows share one 128-lane row.

    The block is [row_tile, fold*dim]; each dim-wide lane segment is an
    independent RMSNorm row (reductions never cross segments).  Loads and
    stores are fully lane-dense, and the final store is a single full-width
    write built via concatenate.
    """
    x = x_ref[...].astype(jnp.float32)                        # [R, fold*dim]
    w = w_ref[...]                                            # [1, fold*dim] f32
    segs = []
    for f in range(fold):                                     # static unroll (fold <= 16)
        seg = x[:, f * dim:(f + 1) * dim]
        ms = jnp.mean(jnp.square(seg), axis=-1, keepdims=True)
        segs.append(seg * lax.rsqrt(ms + eps))
    o_ref[...] = (jnp.concatenate(segs, axis=-1) * w).astype(o_ref.dtype)


# --------------------------------------------------------------------------
# Tiling / VMEM heuristics
# --------------------------------------------------------------------------
def _round_up(n: int, m: int) -> int:
    return ((n + m - 1) // m) * m


def _vmem_capacity_bytes() -> int:
    try:
        cap = int(pltpu.get_tpu_info().vmem_capacity_bytes)
        if cap > 0:
            return cap
    except Exception:
        pass
    # Per-generation fallback table (review): v7x has 64 MiB/TC, v5e/v6e 128 MiB.
    try:
        kind = jax.devices()[0].device_kind.lower()
        if "v7" in kind or "7x" in kind:
            return 64 * 1024 * 1024
    except Exception:
        pass
    return 128 * 1024 * 1024


def _choose_row_tile(rows: int, dim: int, itemsize: int, vmem_cap: int) -> int:
    """Pick a row tile: big enough to hit the HBM roofline, small enough to
    keep >= 4 grid steps (>= 2 per TensorCore on v7x) and fit VMEM."""
    # Sublane packing: 8 rows/vreg for 32-bit, 16 for 16-bit, 32 for 8-bit.
    sublane = {4: 8, 2: 16, 1: 32}.get(itemsize, 8)
    if rows <= sublane:
        return rows  # single full-extent block (block dims == array dims)

    # Budget ~half of (physical - headroom) VMEM for the pipeline.  Per row:
    # double-buffered in + out tiles in x.dtype plus one f32 working copy.
    budget = max(vmem_cap - (16 << 20), 8 << 20) // 2
    per_row = dim * (4 * itemsize + 4)
    tile = budget // max(per_row, 1)
    tile = max(sublane, min(tile, 1024))        # 512-1024 rows already ~roofline
    tile = (tile // sublane) * sublane
    # Target >= 4 grid steps so the DMA pipeline has real prefetch/writeback
    # overlap (and >= 2 steps per TensorCore when v7x shards the row axis).
    tile = min(tile, max(sublane, _round_up(pl.cdiv(rows, 4), sublane)))
    # Never allocate a block larger than the (sublane-rounded) row count.
    tile = min(tile, _round_up(rows, sublane))
    return max(tile, sublane)


def _vmem_limit_bytes(row_tile: int, kdim: int, itemsize: int, vmem_cap: int) -> int:
    pipeline = 2 * row_tile * kdim * itemsize * 2     # double-buffered in + out
    scratch = row_tile * kdim * 4                     # in-kernel f32 working copy
    need = pipeline + scratch + (8 << 20)             # + Mosaic internal scratch
    # Leave >= 16 MiB of physical VMEM headroom (matters on v7x's 64 MiB).
    cap = max(vmem_cap - (16 << 20), 16 << 20)
    return int(min(cap, max(need, 16 << 20)))


# --------------------------------------------------------------------------
# Wrapper
# --------------------------------------------------------------------------
def _launch(kernel, x2d, w2d, row_tile: int, vmem_limit: int):
    rows, kdim = x2d.shape
    grid = (pl.cdiv(rows, row_tile),)
    return pl.pallas_call(
        kernel,
        out_shape=jax.ShapeDtypeStruct((rows, kdim), x2d.dtype),
        grid_spec=pltpu.PrefetchScalarGridSpec(
            num_scalar_prefetch=0,
            grid=grid,
            in_specs=[
                pl.BlockSpec((row_tile, kdim), lambda i: (i, 0)),   # x tile
                pl.BlockSpec((1, kdim), lambda i: (0, 0)),          # weight (resident, f32)
            ],
            out_specs=pl.BlockSpec((row_tile, kdim), lambda i: (i, 0)),
        ),
        # TODO(synk): on v7x, evaluate pltpu.CORE_PARALLEL for the row axis (or
        # an explicit 2-wide core grid) and confirm via trace that both
        # TensorCores run; "parallel" is kept as the portable default here.
        compiler_params=pltpu.CompilerParams(
            dimension_semantics=("parallel",),
            vmem_limit_bytes=vmem_limit),
    )(x2d, w2d)


def rmsnorm(x: jax.Array, weight: jax.Array, eps: float = 1e-6,
            row_tile: int | None = None) -> jax.Array:
    """RMSNorm over the last axis of x, scaled by `weight` (shape [dim])."""
    orig_shape = x.shape
    dim = orig_shape[-1]
    assert weight.shape == (dim,)

    x2d = x.reshape(-1, dim)
    rows = x2d.shape[0]
    itemsize = jnp.dtype(x.dtype).itemsize
    vmem_cap = _vmem_capacity_bytes()

    # Weight stays f32 inside the kernel (fused f32 scale + single downcast).
    w_f32 = weight.astype(jnp.float32)

    # Lane-density fix: if `dim` under-fills the 128-lane vreg and divides 128,
    # fold consecutive rows into the lane axis (pure row-major reshape, no data
    # copy) so the in/out specs are 128-lane dense.
    fold = 1
    if 8 <= dim < 128 and 128 % dim == 0:
        f = 128 // dim
        if rows % f == 0:
            fold = f
    # TODO(synk): dims that neither reach 128 nor divide it (or row counts not
    # divisible by the fold factor) still take the masked-store path below.

    if fold > 1:
        kdim = fold * dim
        rows_k = rows // fold
        xk = x2d.reshape(rows_k, kdim)
        wk = jnp.tile(w_f32, fold).reshape(1, kdim)
        tile = row_tile if row_tile is not None else _choose_row_tile(
            rows_k, kdim, itemsize, vmem_cap)
        vlim = _vmem_limit_bytes(tile, kdim, itemsize, vmem_cap)
        kern = functools.partial(_rmsnorm_packed_kernel, eps=eps, dim=dim, fold=fold)
        out = _launch(kern, xk, wk, tile, vlim)
        return out.reshape(orig_shape)

    tile = row_tile if row_tile is not None else _choose_row_tile(
        rows, dim, itemsize, vmem_cap)
    vlim = _vmem_limit_bytes(tile, dim, itemsize, vmem_cap)
    kern = functools.partial(_rmsnorm_kernel, eps=eps)
    out = _launch(kern, x2d, w_f32.reshape(1, dim), tile, vlim)
    return out.reshape(orig_shape)


def rmsnorm_ref(x: jax.Array, weight: jax.Array, eps: float = 1e-6) -> jax.Array:
    xf = x.astype(jnp.float32)
    inv = lax.rsqrt(jnp.mean(xf * xf, axis=-1, keepdims=True) + eps)
    return (xf * inv * weight.astype(jnp.float32)).astype(x.dtype)


if __name__ == "__main__":
    key = jax.random.PRNGKey(0)
    k_x, k_w, k_x2, k_w2, k_x3 = jax.random.split(key, 5)

    # Shapes implied by the module: x = [batch, seq, hidden], weight = [hidden].
    batch, seq, hidden = 2, 8, 32
    x = jax.random.normal(k_x, (batch, seq, hidden), dtype=jnp.float32)
    weight = 1.0 + 0.1 * jax.random.normal(k_w, (hidden,), dtype=jnp.float32)

    # Test 1: lane-packed path (hidden=32 folds 4 rows into 128 lanes).
    out = jax.block_until_ready(rmsnorm(x, weight, eps=1e-6))
    ref = rmsnorm_ref(x, weight, eps=1e-6)
    assert out.shape == x.shape and out.dtype == x.dtype
    assert jnp.allclose(out, ref, atol=1e-5, rtol=1e-5)

    # Test 2: rows not divisible by the fold factor / row tile — exercises the
    # standard path with a masked edge block (no host-side padding).
    x2 = jax.random.normal(k_x2, (3, 5, hidden), dtype=jnp.float32)
    w2 = jax.random.normal(k_w2, (hidden,), dtype=jnp.float32)
    out2 = jax.block_until_ready(rmsnorm(x2, w2, eps=1e-6))
    ref2 = rmsnorm_ref(x2, w2, eps=1e-6)
    assert out2.shape == x2.shape and out2.dtype == x2.dtype
    assert jnp.allclose(out2, ref2, atol=1e-5, rtol=1e-5)

    # Test 3: lane-dense hidden size (multiple of 128) — standard path, no fold.
    x3 = jax.random.normal(k_x3, (2, 8, 256), dtype=jnp.float32)
    w3 = jnp.ones((256,), dtype=jnp.float32)
    out3 = jax.block_until_ready(rmsnorm(x3, w3, eps=1e-6))
    ref3 = rmsnorm_ref(x3, w3, eps=1e-6)
    assert out3.shape == x3.shape and out3.dtype == x3.dtype
    assert jnp.allclose(out3, ref3, atol=1e-5, rtol=1e-5)

    print("KERNEL_OK")
</pallas_src>

<mosaic_0001>
module attributes {stable_mosaic.version = 11 : i64} {
  func.func @_rmsnorm_packed_kernel(%arg0: i32, %arg1: memref<4x128xf32, #tpu.memory_space<vmem>>, %arg2: memref<1x128xf32, #tpu.memory_space<vmem>>, %arg3: memref<4x128xf32, #tpu.memory_space<vmem>>) attributes {dimension_semantics = [#tpu.dimension_semantics<parallel>], iteration_bounds = array<i64: 1>, scalar_prefetch = 0 : i64, scratch_operands = 0 : i64, tpu.core_type = #tpu.core_type<tc>, window_params = [{transform_indices = @transform_0, window_bounds = array<i64: 4, 128>}, {pipeline_mode = #tpu.pipeline_mode<synchronous>, transform_indices = @transform_1, window_bounds = array<i64: 1, 128>}, {transform_indices = @transform_2, window_bounds = array<i64: 4, 128>}]} {
    %c0 = arith.constant 0 : index
    %c0_0 = arith.constant 0 : index
    %0 = vector.load %arg1[%c0, %c0_0] : memref<4x128xf32, #tpu.memory_space<vmem>>, vector<4x128xf32>
    %c0_1 = arith.constant 0 : index
    %c0_2 = arith.constant 0 : index
    %1 = vector.load %arg2[%c0_1, %c0_2] : memref<1x128xf32, #tpu.memory_space<vmem>>, vector<1x128xf32>
    %2 = vector.extract_strided_slice %0 {offsets = [0, 0], sizes = [4, 32], strides = [1, 1]} : vector<4x128xf32> to vector<4x32xf32>
    %3 = arith.mulf %2, %2 : vector<4x32xf32>
    %cst = arith.constant dense<0.000000e+00> : vector<4xf32>
    %4 = vector.multi_reduction <add>, %3, %cst [1] : vector<4x32xf32> to vector<4xf32>
    %5 = vector.shape_cast %4 : vector<4xf32> to vector<4x1xf32>
    %cst_3 = arith.constant 3.200000e+01 : f32
    %6 = vector.broadcast %cst_3 : f32 to vector<4x1xf32>
    %7 = arith.divf %5, %6 : vector<4x1xf32>
    %cst_4 = arith.constant 9.99999997E-7 : f32
    %8 = vector.broadcast %cst_4 : f32 to vector<4x1xf32>
    %9 = arith.addf %7, %8 : vector<4x1xf32>
    %10 = math.rsqrt %9 : vector<4x1xf32>
    %11 = vector.broadcast %10 : vector<4x1xf32> to vector<4x32xf32>
    %12 = arith.mulf %2, %11 : vector<4x32xf32>
    %13 = vector.extract_strided_slice %0 {offsets = [0, 32], sizes = [4, 32], strides = [1, 1]} : vector<4x128xf32> to vector<4x32xf32>
    %14 = arith.mulf %13, %13 : vector<4x32xf32>
    %cst_5 = arith.constant dense<0.000000e+00> : vector<4xf32>
    %15 = vector.multi_reduction <add>, %14, %cst_5 [1] : vector<4x32xf32> to vector<4xf32>
    %16 = vector.shape_cast %15 : vector<4xf32> to vector<4x1xf32>
    %cst_6 = arith.constant 3.200000e+01 : f32
    %17 = vector.broadcast %cst_6 : f32 to vector<4x1xf32>
    %18 = arith.divf %16, %17 : vector<4x1xf32>
    %cst_7 = arith.constant 9.99999997E-7 : f32
    %19 = vector.broadcast %cst_7 : f32 to vector<4x1xf32>
    %20 = arith.addf %18, %19 : vector<4x1xf32>
    %21 = math.rsqrt %20 : vector<4x1xf32>
    %22 = vector.broadcast %21 : vector<4x1xf32> to vector<4x32xf32>
    %23 = arith.mulf %13, %22 : vector<4x32xf32>
    %24 = vector.extract_strided_slice %0 {offsets = [0, 64], sizes = [4, 32], strides = [1, 1]} : vector<4x128xf32> to vector<4x32xf32>
    %25 = arith.mulf %24, %24 : vector<4x32xf32>
    %cst_8 = arith.constant dense<0.000000e+00> : vector<4xf32>
    %26 = vector.multi_reduction <add>, %25, %cst_8 [1] : vector<4x32xf32> to vector<4xf32>
    %27 = vector.shape_cast %26 : vector<4xf32> to vector<4x1xf32>
    %cst_9 = arith.constant 3.200000e+01 : f32
    %28 = vector.broadcast %cst_9 : f32 to vector<4x1xf32>
    %29 = arith.divf %27, %28 : vector<4x1xf32>
    %cst_10 = arith.constant 9.99999997E-7 : f32
    %30 = vector.broadcast %cst_10 : f32 to vector<4x1xf32>
    %31 = arith.addf %29, %30 : vector<4x1xf32>
    %32 = math.rsqrt %31 : vector<4x1xf32>
    %33 = vector.broadcast %32 : vector<4x1xf32> to vector<4x32xf32>
    %34 = arith.mulf %24, %33 : vector<4x32xf32>
    %35 = vector.extract_strided_slice %0 {offsets = [0, 96], sizes = [4, 32], strides = [1, 1]} : vector<4x128xf32> to vector<4x32xf32>
    %36 = arith.mulf %35, %35 : vector<4x32xf32>
    %cst_11 = arith.constant dense<0.000000e+00> : vector<4xf32>
    %37 = vector.multi_reduction <add>, %36, %cst_11 [1] : vector<4x32xf32> to vector<4xf32>
    %38 = vector.shape_cast %37 : vector<4xf32> to vector<4x1xf32>
    %cst_12 = arith.constant 3.200000e+01 : f32
    %39 = vector.broadcast %cst_12 : f32 to vector<4x1xf32>
    %40 = arith.divf %38, %39 : vector<4x1xf32>
    %cst_13 = arith.constant 9.99999997E-7 : f32
    %41 = vector.broadcast %cst_13 : f32 to vector<4x1xf32>
    %42 = arith.addf %40, %41 : vector<4x1xf32>
    %43 = math.rsqrt %42 : vector<4x1xf32>
    %44 = vector.broadcast %43 : vector<4x1xf32> to vector<4x32xf32>
    %45 = arith.mulf %35, %44 : vector<4x32xf32>
    %46 = tpu.concatenate %12, %23, %34, %45 in 1 : vector<4x32xf32>, vector<4x32xf32>, vector<4x32xf32>, vector<4x32xf32> -> vector<4x128xf32>
    %47 = vector.broadcast %1 : vector<1x128xf32> to vector<4x128xf32>
    %48 = arith.mulf %46, %47 : vector<4x128xf32>
    %c0_14 = arith.constant 0 : index
    %c0_15 = arith.constant 0 : index
    %49 = vector.load %arg3[%c0_14, %c0_15] : memref<4x128xf32, #tpu.memory_space<vmem>>, vector<4x128xf32>
    tpu.vector_store %arg3[%c0_14, %c0_15], %48 {strides = array<i32>} : memref<4x128xf32, #tpu.memory_space<vmem>>, vector<4x128xf32>,
    return
  }
  func.func @transform_0(%arg0: i32) -> (i32, i32) {
    %c0_i32 = arith.constant 0 : i32
    %c0_i32_0 = arith.constant 0 : i32
    return %arg0, %c0_i32 : i32, i32
  }
  func.func @transform_1(%arg0: i32) -> (i32, i32) {
    %c0_i32 = arith.constant 0 : i32
    %c0_i32_0 = arith.constant 0 : i32
    %c0_i32_1 = arith.constant 0 : i32
    return %c0_i32, %c0_i32_0 : i32, i32
  }
  func.func @transform_2(%arg0: i32) -> (i32, i32) {
    %c0_i32 = arith.constant 0 : i32
    %c0_i32_0 = arith.constant 0 : i32
    return %arg0, %c0_i32 : i32, i32
  }
}

</mosaic_0001>

<llo_original>
// kernel: tpu_custom_call.1
$region0: #{tpu_custom_call.1}
  #allocation0 [shape = 'u32[]', space=smem, size = 0x4, offset = 0x4, fixed_abs, tag = 'smem constant byte address 0x4 - core index']
  #allocation1 [shape = 'u32[144,128]{1,0:T(1,128)}', space=vmem, size = 0x12000, scoped, tag = 'internal scratch']
  %s0 = inlined_call_operand.hbm [shape: f32[4,128], index: 0, kind: input, shape index: {}]
  %s1 = inlined_call_operand.vmem [shape: f32[1,128], index: 1, kind: input, shape index: {}]
  %s2 = inlined_call_operand.hbm [shape: f32[4,128], index: 2, kind: output, shape index: {}]
  %s3 = sld [smem:[#allocation0]]
  $region22: #{tpu_custom_call.1} parent=0
    _
  %s5 = ssub.s32 1, %s3
  %s6 = scalar_select 0, %s5, %s3
  $region1: #{tpu_custom_call.1} parent=0
    #allocation2 [shape = 'u8[2048]{0}', space=vmem, size = 0x800, scoped, tag = 'input window, operand 0, single buffered']
    #allocation3 [shape = 's32[1]{0}', space=sflag, size = 0x4, scoped, tag = 'scoped memory for tpu_custom_call.1']
    #allocation4 [shape = 's32[1]{0}', space=sflag, size = 0x4, scoped, tag = 'scoped memory for tpu_custom_call.1']
    #allocation5 [shape = 'u8[2048]{0}', space=vmem, size = 0x800, scoped, tag = 'output window, operand 0, single buffered']
    %7 = vsyncpa [#allocation3], 0
    %8 = vsyncpa [#allocation4], 0
    // Predicated region
    $region2: #{tpu_custom_call.1} parent=1 // pred_check
      _
    $region3: #{tpu_custom_call.1} parent=1 // pred_check_branch
      %10 = sbr.rel (0) target = $region5
    $region4: #{tpu_custom_call.1} parent=1 // pred_region
      %s12 = ssub.s32 64, 64
      %13 = vsyncadd [#allocation3], %s12
      %s15 = sshll.u32 [#allocation2], 4
      %s16 = int_to_ptr.vmem [resolvable:$true] %s15
      %18 = dma.hbm_to_vmem [thread:$0]  %s0, 64, %s16, [#allocation3]
    $region5: #{tpu_custom_call.1} parent=1 // pred_fallthru
      _
    // Predicated region
    $region6: #{tpu_custom_call.1} parent=1 // pred_check
      _
    $region7: #{tpu_custom_call.1} parent=1 // pred_check_branch
      %20 = sbr.rel (0) target = $region9
    $region8: #{tpu_custom_call.1} parent=1 // pred_region
      _
    $region9: #{tpu_custom_call.1} parent=1 // pred_fallthru
      _
    // Predicated region
    $region10: #{tpu_custom_call.1} parent=1 // pred_check
      _
    $region11: #{tpu_custom_call.1} parent=1 // pred_check_branch
      %22 = sbr.rel (0) target = $region13
    $region12: #{tpu_custom_call.1} parent=1 // pred_region
      %23 = dma.done [#allocation3], 64
    $region13: #{tpu_custom_call.1} parent=1 // pred_fallthru
      _
    %v24 = vld [vmem:[#allocation2] sm:$0xf]
    %v25 = vld [vmem:[%s1] sm:$0x1]
    %v26 = vmul.f32 %v24, %v24
    %vm27 = vcmask 257024
    %v28 = vsel %vm27, %v26, 0.0
    %29 = vadd.xlane.f32.xlu0 %v28
    %v30 = vpop.xlane.xlu0 %29
    %v31 = vrcp.pop 32.0
    %v32 = vmul.f32 %v30, %v31
    %v33 = vadd.f32 %v32, 1e-06
    %v34 = vrsqrt.pop %v33
    %v35 = vmul.f32 %v24, %v34
    %37 = vrot.lane.b32.xlu0 %v26, 96
    %v38 = vpop.permute.xlu0 %37
    %v40 = vsel %vm27, %v38, 0.0
    %41 = vadd.xlane.f32.xlu0 %v40
    %v42 = vpop.xlane.xlu0 %41
    %v43 = vmul.f32 %v42, %v31
    %v44 = vadd.f32 %v43, 1e-06
    %v45 = vrsqrt.pop %v44
    %v46 = vmul.f32 %v24, %v45
    %47 = vrot.lane.b32.xlu0 %v26, 64
    %v48 = vpop.permute.xlu0 %47
    %v50 = vsel %vm27, %v48, 0.0
    %51 = vadd.xlane.f32.xlu0 %v50
    %v52 = vpop.xlane.xlu0 %51
    %v53 = vmul.f32 %v52, %v31
    %v54 = vadd.f32 %v53, 1e-06
    %v55 = vrsqrt.pop %v54
    %v56 = vmul.f32 %v24, %v55
    %57 = vrot.lane.b32.xlu0 %v26, 32
    %v58 = vpop.permute.xlu0 %57
    %v60 = vsel %vm27, %v58, 0.0
    %61 = vadd.xlane.f32.xlu0 %v60
    %v62 = vpop.xlane.xlu0 %61
    %v63 = vmul.f32 %v62, %v31
    %v64 = vadd.f32 %v63, 1e-06
    %v65 = vrsqrt.pop %v64
    %v66 = vmul.f32 %v24, %v65
    %vm67 = vcmask 261120
    %v68 = vsel %vm67, %v35, %v46
    %vm69 = vcmask 523264
    %v70 = vsel %vm69, %v68, %v56
    %vm71 = vcmask 785408
    %v72 = vsel %vm71, %v70, %v66
    %v74 = vlaneseq
    %v75 = vshrl.u32 %v74, 7
    %v76 = vsub.s32 0, %v75
    %v77 = vrot.slane %v25, %v76
    %v79 = vmul.f32 %v72, %v77
    %80 = vst [vmem:[#allocation5] sm:$0xf] %v79
    // Predicated region
    $region14: #{tpu_custom_call.1} parent=1 // pred_check
      _
    $region15: #{tpu_custom_call.1} parent=1 // pred_check_branch
      %82 = sbr.rel (0) target = $region17
    $region16: #{tpu_custom_call.1} parent=1 // pred_region
      %s84 = ssub.s32 64, 64
      %85 = vsyncadd [#allocation4], %s84
      %s87 = sshll.u32 [#allocation5], 4
      %s88 = int_to_ptr.vmem [resolvable:$true] %s87
      %90 = dma.vmem_to_hbm [thread:$0]  %s88, 64, %s2, [#allocation4]
    $region17: #{tpu_custom_call.1} parent=1 // pred_fallthru
      _
    // Predicated region
    $region18: #{tpu_custom_call.1} parent=1 // pred_check
      _
    $region19: #{tpu_custom_call.1} parent=1 // pred_check_branch
      %92 = sbr.rel (0) target = $region21
    $region20: #{tpu_custom_call.1} parent=1 // pred_region
      %93 = dma.done [#allocation4], 64
    $region21: #{tpu_custom_call.1} parent=1 // pred_fallthru
      _
    %94 = vsyncpa [#allocation3], 1
    %95 = vsyncpa [#allocation4], 1

</llo_original>
